<compile_context>
chip_gen: v5e
topology: v5e:2x2
jax: 0.10.0
libtpu: 0.0.40
codegen_flags: <defaults>
</compile_context>

<pallas_src>
import functools
from math import sqrt

import jax
import jax.numpy as jnp
from jax.experimental import pallas as pl
from jax.experimental.pallas import tpu as pltpu


def _round_up(v, m):
    return ((v + m - 1) // m) * m


def _egemm_single_kernel(w_ref, p_ref, b_ref, o_ref, *, scale):
    """Single reduction step: out[1,to,tm] = scale * W[to,K] @ P_T[K,tm] + b."""
    acc = jnp.dot(w_ref[...], p_ref[0], preferred_element_type=jnp.float32)
    o_ref[0] = (acc * scale + b_ref[...].astype(jnp.float32)).astype(o_ref.dtype)


def _egemm_multi_kernel(w_ref, p_ref, b_ref, o_ref, acc_ref, *, scale):
    """K-tiled reduction with a resident f32 VMEM accumulator."""
    k = pl.program_id(3)

    @pl.when(k == 0)
    def _():
        acc_ref[...] = jnp.zeros_like(acc_ref)

    acc_ref[...] += jnp.dot(w_ref[...], p_ref[0],
                            preferred_element_type=jnp.float32)

    @pl.when(k == pl.num_programs(3) - 1)
    def _():
        # Equal-LR scale applied once to the accumulator (== scaling the
        # weight), then bias, then a single lane-dense store.
        o_ref[0] = (acc_ref[...] * scale
                    + b_ref[...].astype(jnp.float32)).astype(o_ref.dtype)


def _equal_gemm_t(patches_t, w_mat, bias, scale, out_dtype):
    """out[n, o, m] = scale * sum_k w_mat[o, k] * patches_t[n, k, m] + bias[o]."""
    N, K, M = patches_t.shape
    O = w_mat.shape[0]
    in_itemsize = jnp.dtype(patches_t.dtype).itemsize

    # ---- tile selection -----------------------------------------------------
    # O rides the sublane axis of the output: pad to 8, tile up to 256.
    O_pad8 = _round_up(O, 8)
    to = min(O_pad8, 256)
    O_pad = _round_up(O_pad8, to)

    # K: single reduction step (pad to 8 only) when it fits comfortably in
    # VMEM; otherwise tile by 512 (multiple of both 8 and 128, required once K
    # is actually blocked).
    K8 = _round_up(K, 8)
    single_k = K8 <= 2048
    if single_k:
        tk = K_pad = K8
    else:
        tk = 512
        K_pad = _round_up(K, tk)

    # M (= Ho*Wo) is the lane-dense output dim: multiple of 128, sized so the
    # double-buffered patches tile stays under ~24 MiB.
    tm_budget = (24 * 1024 * 1024) // max(1, 2 * tk * in_itemsize)
    tm_budget = max(128, (tm_budget // 128) * 128)
    tm = min(_round_up(M, 128), 2048, tm_budget)
    M_pad = _round_up(M, tm)

    # ---- zero padding (padded K/O/M contribute nothing / get sliced off) ----
    p_p = jnp.pad(patches_t, ((0, 0), (0, K_pad - K), (0, M_pad - M)))
    w_p = jnp.pad(w_mat, ((0, O_pad - O), (0, K_pad - K)))
    b_p = jnp.pad(bias, (0, O_pad - O)).reshape(O_pad, 1).astype(jnp.float32)

    n_o, n_m, n_k = O_pad // to, M_pad // tm, K_pad // tk

    cost = pl.CostEstimate(
        flops=2 * N * O * K * M,                              # real dims
        transcendentals=0,
        bytes_accessed=(
            N * n_o * K_pad * M_pad * in_itemsize             # patches, re-read per O tile
            + N * n_m * O_pad * K_pad * in_itemsize           # weight, re-read per (n, m) tile
            + N * O_pad * M_pad * jnp.dtype(out_dtype).itemsize),
    )

    compiler_params = pltpu.CompilerParams(
        dimension_semantics=(("parallel", "parallel", "parallel") if single_k
                             else ("parallel", "parallel", "parallel",
                                   "arbitrary")),
        vmem_limit_bytes=48 * 1024 * 1024,
    )

    if single_k:
        grid_spec = pltpu.PrefetchScalarGridSpec(
            num_scalar_prefetch=0,
            grid=(N, n_o, n_m),
            in_specs=[
                pl.BlockSpec((to, K_pad), lambda n, oi, mi: (oi, 0)),      # W
                pl.BlockSpec((1, K_pad, tm), lambda n, oi, mi: (n, 0, mi)),  # P_T
                pl.BlockSpec((to, 1), lambda n, oi, mi: (oi, 0)),          # bias
            ],
            out_specs=pl.BlockSpec((1, to, tm), lambda n, oi, mi: (n, oi, mi)),
            scratch_shapes=[],
        )
        kernel = functools.partial(_egemm_single_kernel, scale=scale)
    else:
        grid_spec = pltpu.PrefetchScalarGridSpec(
            num_scalar_prefetch=0,
            grid=(N, n_o, n_m, n_k),
            in_specs=[
                pl.BlockSpec((to, tk), lambda n, oi, mi, ki: (oi, ki)),
                pl.BlockSpec((1, tk, tm), lambda n, oi, mi, ki: (n, ki, mi)),
                pl.BlockSpec((to, 1), lambda n, oi, mi, ki: (oi, 0)),
            ],
            out_specs=pl.BlockSpec((1, to, tm),
                                   lambda n, oi, mi, ki: (n, oi, mi)),
            scratch_shapes=[pltpu.VMEM((to, tm), jnp.float32)],
        )
        kernel = functools.partial(_egemm_multi_kernel, scale=scale)

    out = pl.pallas_call(
        kernel,
        out_shape=jax.ShapeDtypeStruct((N, O_pad, M_pad), out_dtype),
        grid_spec=grid_spec,
        compiler_params=compiler_params,
        cost_estimate=cost,
    )(w_p, p_p, b_p)

    return out[:, :O, :M]


def equal_conv2d(x, weight_orig, bias, *, stride=1, padding=1):
    """x: [N, C, H, W]; weight_orig: [O, C, kH, kW]; bias: [O] -> [N, O, Ho, Wo]."""
    N, C, H, W = x.shape
    O, Cw, kH, kW = weight_orig.shape
    assert Cw == C
    fan_in = C * kH * kW
    scale = sqrt(2.0 / fan_in)

    H_out = (H + 2 * padding - kH) // stride + 1
    W_out = (W + 2 * padding - kW) // stride + 1

    # --- channel-major im2col straight from NCHW (no activation transposes) --
    # P_T[n, k=(c,dy,dx), m=(ho,wo)] matches weight_orig.reshape(O, C*kH*kW),
    # and the GEMM output [N, O, Ho*Wo] reshapes directly back to NCHW.
    # TODO(synk): the kH*kW-expanded patches array could be avoided entirely by
    # fusing patch extraction into the kernel (per-(dy,dx) shifted matmuls on a
    # row band of the padded input); kept as plain-JAX glue here.
    x_padded = jnp.pad(
        x, ((0, 0), (0, 0), (padding, padding), (padding, padding)))
    cols = []
    for dy in range(kH):
        for dx in range(kW):
            cols.append(
                x_padded[:, :,
                         dy:dy + stride * (H_out - 1) + 1:stride,
                         dx:dx + stride * (W_out - 1) + 1:stride])
    patches_t = jnp.stack(cols, axis=2)                 # [N, C, kH*kW, Ho, Wo]
    patches_t = patches_t.reshape(N, C * kH * kW, H_out * W_out)

    # Weight in its native OIHW flatten -> [O, C*kH*kW].  Cast to the
    # activation dtype so bf16 activations feed the MXU at full rate.
    w_mat = weight_orig.reshape(O, C * kH * kW).astype(x.dtype)
    bias_f32 = bias.astype(jnp.float32)

    out = _equal_gemm_t(patches_t, w_mat, bias_f32, scale, x.dtype)  # [N,O,M]
    return out.reshape(N, O, H_out, W_out)


if __name__ == "__main__":
    # EqualConv2d(in_channel=4, out_channel=8, kernel_size=3, padding=1)
    N, C, H, W = 2, 4, 16, 16
    O, kH, kW = 8, 3, 3
    padding, stride = 1, 1

    key = jax.random.PRNGKey(0)
    kx, kw = jax.random.split(key)

    # __init__: conv.weight.data.normal_() -> N(0,1); conv.bias.data.zero_()
    weight_orig = jax.random.normal(kw, (O, C, kH, kW), dtype=jnp.float32)
    bias = jnp.zeros((O,), dtype=jnp.float32)
    x = jax.random.normal(kx, (N, C, H, W), dtype=jnp.float32)

    out = equal_conv2d(x, weight_orig, bias, stride=stride, padding=padding)
    out = jax.block_until_ready(out)

    # Pure-JAX reference (F.conv2d with the equal-LR scaled weight).
    w_scaled = weight_orig * sqrt(2.0 / (C * kH * kW))
    ref = jax.lax.conv_general_dilated(
        x, w_scaled, window_strides=(stride, stride),
        padding=((padding, padding), (padding, padding)),
        dimension_numbers=("NCHW", "OIHW", "NCHW"),
    ) + bias.reshape(1, O, 1, 1)

    assert out.shape == (N, O, H, W)
    assert jnp.allclose(out, ref, atol=1e-4, rtol=1e-4)

    print("KERNEL_OK")
</pallas_src>

<mosaic_0001>
module attributes {stable_mosaic.version = 11 : i64} {
  func.func @_egemm_single_kernel(%arg0: i32, %arg1: i32, %arg2: i32, %arg3: memref<8x40xf32, #tpu.memory_space<vmem>>, %arg4: memref<1x40x256xf32, #tpu.memory_space<vmem>>, %arg5: memref<8x1xf32, #tpu.memory_space<vmem>>, %arg6: memref<1x8x256xf32, #tpu.memory_space<vmem>>) attributes {dimension_semantics = [#tpu.dimension_semantics<parallel>, #tpu.dimension_semantics<parallel>, #tpu.dimension_semantics<parallel>], iteration_bounds = array<i64: 2, 1, 1>, scalar_prefetch = 0 : i64, scratch_operands = 0 : i64, tpu.core_type = #tpu.core_type<tc>, window_params = [{transform_indices = @transform_0, window_bounds = array<i64: 8, 40>}, {transform_indices = @transform_1, window_bounds = array<i64: 1, 40, 256>}, {transform_indices = @transform_2, window_bounds = array<i64: 8, 1>}, {transform_indices = @transform_3, window_bounds = array<i64: 1, 8, 256>}]} {
    %c0 = arith.constant 0 : index
    %c0_0 = arith.constant 0 : index
    %0 = vector.load %arg3[%c0, %c0_0] : memref<8x40xf32, #tpu.memory_space<vmem>>, vector<8x40xf32>
    %c0_1 = arith.constant 0 : index
    %c0_2 = arith.constant 0 : index
    %c0_3 = arith.constant 0 : index
    %1 = vector.load %arg4[%c0_1, %c0_2, %c0_3] : memref<1x40x256xf32, #tpu.memory_space<vmem>>, vector<1x40x256xf32>
    %2 = vector.shape_cast %1 : vector<1x40x256xf32> to vector<40x256xf32>
    %cst = arith.constant dense<0.000000e+00> : vector<8x256xf32>
    %3 = tpu.matmul %0, %2, %cst {dimension_numbers = #tpu.dot_dimension_numbers<[1], [0], [0], [1], [0, 0, 1, 1], [], []>} : vector<8x40xf32>, vector<40x256xf32>, vector<8x256xf32> -> vector<8x256xf32>
    %cst_4 = arith.constant 0.235702261 : f32
    %4 = vector.broadcast %cst_4 : f32 to vector<8x256xf32>
    %5 = arith.mulf %3, %4 : vector<8x256xf32>
    %c0_5 = arith.constant 0 : index
    %c0_6 = arith.constant 0 : index
    %6 = vector.load %arg5[%c0_5, %c0_6] : memref<8x1xf32, #tpu.memory_space<vmem>>, vector<8x1xf32>
    %7 = vector.broadcast %6 : vector<8x1xf32> to vector<8x256xf32>
    %8 = arith.addf %5, %7 : vector<8x256xf32>
    %c0_7 = arith.constant 0 : index
    %c0_8 = arith.constant 0 : index
    %c0_9 = arith.constant 0 : index
    %9 = vector.load %arg6[%c0_7, %c0_8, %c0_9] : memref<1x8x256xf32, #tpu.memory_space<vmem>>, vector<1x8x256xf32>
    %10 = vector.shape_cast %9 : vector<1x8x256xf32> to vector<8x256xf32>
    %11 = vector.shape_cast %8 : vector<8x256xf32> to vector<1x8x256xf32>
    tpu.vector_store %arg6[%c0_7, %c0_8, %c0_9], %11 {strides = array<i32>} : memref<1x8x256xf32, #tpu.memory_space<vmem>>, vector<1x8x256xf32>,
    return
  }
  func.func @transform_0(%arg0: i32, %arg1: i32, %arg2: i32) -> (i32, i32) {
    %c0_i32 = arith.constant 0 : i32
    %c0_i32_0 = arith.constant 0 : i32
    return %arg1, %c0_i32 : i32, i32
  }
  func.func @transform_1(%arg0: i32, %arg1: i32, %arg2: i32) -> (i32, i32, i32) {
    %c0_i32 = arith.constant 0 : i32
    %c0_i32_0 = arith.constant 0 : i32
    return %arg0, %c0_i32, %arg2 : i32, i32, i32
  }
  func.func @transform_2(%arg0: i32, %arg1: i32, %arg2: i32) -> (i32, i32) {
    %c0_i32 = arith.constant 0 : i32
    %c0_i32_0 = arith.constant 0 : i32
    return %arg1, %c0_i32 : i32, i32
  }
  func.func @transform_3(%arg0: i32, %arg1: i32, %arg2: i32) -> (i32, i32, i32) {
    %c0_i32 = arith.constant 0 : i32
    return %arg0, %arg1, %arg2 : i32, i32, i32
  }
}

</mosaic_0001>

<llo_original>
// kernel: tpu_custom_call.1
$region0: #{tpu_custom_call.1}
  #allocation0 [shape = 'u32[]', space=smem, size = 0x4, offset = 0x4, fixed_abs, tag = 'smem constant byte address 0x4 - core index']
  #allocation1 [shape = 'u32[72,128]{1,0:T(1,128)}', space=vmem, size = 0x9000, scoped, tag = 'internal scratch']
  %s0 = inlined_call_operand.vmem [shape: f32[8,40], index: 0, kind: input, shape index: {}]
  %s1 = inlined_call_operand.hbm [shape: f32[2,40,256], index: 1, kind: input, shape index: {}]
  %s2 = inlined_call_operand.vmem [shape: f32[8,1], index: 2, kind: input, shape index: {}]
  %s3 = inlined_call_operand.hbm [shape: f32[2,8,256], index: 3, kind: output, shape index: {}]
  %s4 = sld [smem:[#allocation0]]
  $region49: #{tpu_custom_call.1} parent=0
    _
  %s6 = ssub.s32 1, %s4
  %s7 = scalar_select 0, %s6, %s4
  $region1: #{tpu_custom_call.1} parent=0
    #allocation2 [shape = 'u8[81920]{0}', space=vmem, size = 0x14000, scoped, tag = 'input window, operand 1']
    #allocation3 [shape = 's32[2]{0}', space=sflag, size = 0x8, scoped, tag = 'scoped memory for tpu_custom_call.1']
    #allocation4 [shape = 's32[2]{0}', space=sflag, size = 0x8, scoped, tag = 'scoped memory for tpu_custom_call.1']
    #allocation5 [shape = 'u8[16384]{0}', space=vmem, size = 0x4000, scoped, tag = 'output window, operand 0']
    %8 = vsyncpa [#allocation3], 0
    %s9 = scalar_lea.sflag [#allocation3], 1
    %10 = vsyncpa %s9, 0
    %11 = vsyncpa [#allocation4], 0
    %s12 = scalar_lea.sflag [#allocation4], 1
    %13 = vsyncpa %s12, 0
    loop: start=0, step=1, limit=4
    $region2: #{tpu_custom_call.1} parent=1 // loop_pre_header
      _
    $region3: #{tpu_custom_call.1} parent=1 // loop_header
      %s15 = sphi 0, %s19
      %p16 = scmp.ge.s32.totalorder %s15, 4
      %s22 = sphi 0, %s41
      %s23 = sphi 0, %s37
      %s24 = sphi 0, %s33
      %s25 = sphi 0, %s22
      %s26 = sphi 0, %s23
      %s27 = sphi 0, %s24
      %s28 = sphi 0, %s25
      %s29 = sphi 0, %s26
      %s30 = sphi 0, %s27
      %s44 = sphi 0, %s46
      %s47 = sphi 0, %s44
      %s48 = sphi 0, %s47
      %s64 = sphi 0, %s48
      %s72 = sphi 0, %s74
      %s75 = sphi 0, %s72
      %s76 = sphi 0, %s75
      %s92 = sphi 0, %s76
      %s98 = sphi 0, %s100
      %s101 = sphi 0, %s98
      %s102 = sphi 0, %s101
      %s118 = sphi 0, %s102
      %s128 = sphi 0, %s130
      %s131 = sphi 0, %s128
      %s132 = sphi 0, %s131
      %s148 = sphi 0, %s132
    $region4: #{tpu_custom_call.1} parent=1 // loop_header_branch
      %18 = sbr.rel (%p16) target = $region8
    $region5: #{tpu_custom_call.1} parent=1 // loop_body
      %s20 = ssub.s32 %s15, 1
      %s21 = ssub.s32 %s15, 2
      %s31 = sadd.s32 1, %s24
      %p32 = scmp.ge.s32.totalorder %s31, 1
      %s33 = scalar_select %p32, 0, %s31
      %s34 = sadd.s32 1, %s23
      %s35 = scalar_select %p32, %s34, %s23
      %p36 = scmp.ge.s32.totalorder %s35, 1
      %s37 = scalar_select %p36, 0, %s35
      %s38 = sadd.s32 1, %s22
      %s39 = scalar_select %p36, %s38, %s22
      %p40 = scmp.ge.s32.totalorder %s39, 2
      %s41 = scalar_select %p40, 0, %s39
      %s42 = ssub.s32 %s23, %s37
      %p43 = scmp.eq.s32.totalorder %s42, 0
      %s45 = sadd.s32 %s44, 1
      %s46 = scalar_select %p43, %s44, %s45
      %p49 = pneg %p43
      %p50 = scmp.eq.s32.totalorder %s15, 1
      %p51 = por %p49, %p50
      %p52 = scmp.ne.s32.totalorder %s44, %s47
      %p53 = scmp.eq.s32.totalorder %s15, 0
      %p54 = por %p52, %p53
      %p55 = scmp.ne.s32.totalorder %s44, %s47
      %p56 = scmp.eq.s32.totalorder %s20, 1
      %p57 = por %p55, %p56
      %p58 = scmp.ne.s32.totalorder %s47, %s48
      %p59 = scmp.eq.s32.totalorder %s20, 0
      %p60 = por %p58, %p59
      %p61 = scmp.ne.s32.totalorder %s47, %s48
      %p62 = scmp.eq.s32.totalorder %s21, 1
      %p63 = por %p61, %p62
      %p65 = scmp.ne.s32.totalorder %s48, %s64
      %p66 = scmp.eq.s32.totalorder %s21, 0
      %p67 = por %p65, %p66
      %s68 = ssub.s32 %s22, %s41
      %s69 = ssub.s32 %s24, %s33
      %s70 = sor.u32 %s68, %s69
      %p71 = scmp.eq.s32.totalorder %s70, 0
      %s73 = sadd.s32 %s72, 1
      %s74 = scalar_select %p71, %s72, %s73
      %p77 = pneg %p71
      %p78 = scmp.eq.s32.totalorder %s15, 1
      %p79 = por %p77, %p78
      %p80 = scmp.ne.s32.totalorder %s72, %s75
      %p81 = scmp.eq.s32.totalorder %s15, 0
      %p82 = por %p80, %p81
      %p83 = scmp.ne.s32.totalorder %s72, %s75
      %p84 = scmp.eq.s32.totalorder %s20, 1
      %p85 = por %p83, %p84
      %p86 = scmp.ne.s32.totalorder %s75, %s76
      %p87 = scmp.eq.s32.totalorder %s20, 0
      %p88 = por %p86, %p87
      %p89 = scmp.ne.s32.totalorder %s75, %s76
      %p90 = scmp.eq.s32.totalorder %s21, 1
      %p91 = por %p89, %p90
      %p93 = scmp.ne.s32.totalorder %s76, %s92
      %p94 = scmp.eq.s32.totalorder %s21, 0
      %p95 = por %p93, %p94
      %s96 = ssub.s32 %s23, %s37
      %p97 = scmp.eq.s32.totalorder %s96, 0
      %s99 = sadd.s32 %s98, 1
      %s100 = scalar_select %p97, %s98, %s99
      %p103 = pneg %p97
      %p104 = scmp.eq.s32.totalorder %s15, 1
      %p105 = por %p103, %p104
      %p106 = scmp.ne.s32.totalorder %s98, %s101
      %p107 = scmp.eq.s32.totalorder %s15, 0
      %p108 = por %p106, %p107
      %p109 = scmp.ne.s32.totalorder %s98, %s101
      %p110 = scmp.eq.s32.totalorder %s20, 1
      %p111 = por %p109, %p110
      %p112 = scmp.ne.s32.totalorder %s101, %s102
      %p113 = scmp.eq.s32.totalorder %s20, 0
      %p114 = por %p112, %p113
      %p115 = scmp.ne.s32.totalorder %s101, %s102
      %p116 = scmp.eq.s32.totalorder %s21, 1
      %p117 = por %p115, %p116
      %p119 = scmp.ne.s32.totalorder %s102, %s118
      %p120 = scmp.eq.s32.totalorder %s21, 0
      %p121 = por %p119, %p120
      %s122 = ssub.s32 %s22, %s41
      %s123 = ssub.s32 %s23, %s37
      %s124 = sor.u32 %s122, %s123
      %s125 = ssub.s32 %s24, %s33
      %s126 = sor.u32 %s124, %s125
      %p127 = scmp.eq.s32.totalorder %s126, 0
      %s129 = sadd.s32 %s128, 1
      %s130 = scalar_select %p127, %s128, %s129
      %p133 = pneg %p127
      %p134 = scmp.eq.s32.totalorder %s15, 1
      %p135 = por %p133, %p134
      %p136 = scmp.ne.s32.totalorder %s128, %s131
      %p137 = scmp.eq.s32.totalorder %s15, 0
      %p138 = por %p136, %p137
      %p139 = scmp.ne.s32.totalorder %s128, %s131
      %p140 = scmp.eq.s32.totalorder %s20, 1
      %p141 = por %p139, %p140
      %p142 = scmp.ne.s32.totalorder %s131, %s132
      %p143 = scmp.eq.s32.totalorder %s20, 0
      %p144 = por %p142, %p143
      %p145 = scmp.ne.s32.totalorder %s131, %s132
      %p146 = scmp.eq.s32.totalorder %s21, 1
      %p147 = por %p145, %p146
      %p149 = scmp.ne.s32.totalorder %s132, %s148
      %p150 = scmp.eq.s32.totalorder %s21, 0
      %p151 = por %p149, %p150
      %p152 = scmp.le.s32.totalorder 1, %s15
      %p153 = scmp.lt.s32.totalorder %s15, 3
      %p154 = pnand %p152, %p153
      %p155 = pneg %p154
      // Predicated region
      $region9: #{tpu_custom_call.1} parent=5 // pred_check
        _
      $region10: #{tpu_custom_call.1} parent=5 // pred_check_branch
        %157 = sbr.rel (%p154) target = $region12
      $region11: #{tpu_custom_call.1} parent=5 // pred_region
        %s158 = ssub.s32 %s15, 1
        // Predicated region
        $region13: #{tpu_custom_call.1} parent=11 // pred_check
          %p159 = pneg %p60
        $region14: #{tpu_custom_call.1} parent=11 // pred_check_branch
          %161 = sbr.rel (%p159) target = $region16
        $region15: #{tpu_custom_call.1} parent=11 // pred_region
          %p162 = scmp.lt.s32.totalorder %s26, 0
          %s163 = scalar_select %p162, %s26, 0
          %s164 = smul.addr %s163, 8
          %s165 = scalar_lea.vmem %s0, %s164
        $region16: #{tpu_custom_call.1} parent=11 // pred_fallthru
          _
        // Predicated region
        $region17: #{tpu_custom_call.1} parent=11 // pred_check
          %p166 = pneg %p114
        $region18: #{tpu_custom_call.1} parent=11 // pred_check_branch
          %168 = sbr.rel (%p166) target = $region20
        $region19: #{tpu_custom_call.1} parent=11 // pred_region
          %p169 = scmp.lt.s32.totalorder %s26, 0
          %s170 = scalar_select %p169, %s26, 0
          %s171 = smul.addr %s170, 8
          %s172 = scalar_lea.vmem %s2, %s171
        $region20: #{tpu_custom_call.1} parent=11 // pred_fallthru
          _
      $region12: #{tpu_custom_call.1} parent=5 // pred_fallthru
        _
      %p173 = scmp.lt.s32.totalorder %s15, 2
      // Predicated region
      $region21: #{tpu_custom_call.1} parent=5 // pred_check
        %p174 = pneg %p173
      $region22: #{tpu_custom_call.1} parent=5 // pred_check_branch
        %176 = sbr.rel (%p174) target = $region24
      $region23: #{tpu_custom_call.1} parent=5 // pred_region
        // Predicated region
        $region25: #{tpu_custom_call.1} parent=23 // pred_check
          %p177 = pneg %p82
        $region26: #{tpu_custom_call.1} parent=23 // pred_check_branch
          %179 = sbr.rel (%p177) target = $region28
        $region27: #{tpu_custom_call.1} parent=23 // pred_region
          %s180 = sand.u32 %s72, 1
          %s181 = scalar_lea.sflag [#allocation3], %s180
          %s182 = sand.u32 %s72, 1
          %s183 = smul.addr %s182, 80
          %s184 = scalar_lea.vmem [#allocation2], %s183
          %s185 = smul.u32 2, %s24
          %187 = vsyncadd %s181, 0
          %s188 = smul.addr %s22, 10
          %s189 = sadd.s32 %s185, %s188
          %s190 = smul.addr %s189, 8
          %s191 = scalar_lea.hbm %s1, %s190
          %s192 = sshll.u32 %s191, 4
          %s193 = int_to_ptr.hbm [resolvable:$true] %s192
          %s194 = sshll.u32 %s184, 4
          %s195 = int_to_ptr.vmem [resolvable:$true] %s194
          %200 = dma.hbm_to_vmem [thread:$0]  %s193, 1280, %s195, %s181, 256, 256, 16
        $region28: #{tpu_custom_call.1} parent=23 // pred_fallthru
          _
      $region24: #{tpu_custom_call.1} parent=5 // pred_fallthru
        _
      %p201 = scmp.le.s32.totalorder 1, %s15
      %p202 = scmp.lt.s32.totalorder %s15, 3
      %p203 = pnand %p201, %p202
      %p204 = pneg %p203
      // Predicated region
      $region29: #{tpu_custom_call.1} parent=5 // pred_check
        _
      $region30: #{tpu_custom_call.1} parent=5 // pred_check_branch
        %206 = sbr.rel (%p203) target = $region32
      $region31: #{tpu_custom_call.1} parent=5 // pred_region
        %s207 = ssub.s32 %s15, 1
        %s208 = sand.u32 %s75, 1
        %s209 = scalar_lea.sflag [#allocation3], %s208
        %s210 = sand.u32 %s75, 1
        %s211 = smul.addr %s210, 80
        %s212 = scalar_lea.vmem [#allocation2], %s211
        // Predicated region
        $region33: #{tpu_custom_call.1} parent=31 // pred_check
          %p213 = pneg %p88
        $region34: #{tpu_custom_call.1} parent=31 // pred_check_branch
          %215 = sbr.rel (%p213) target = $region36
        $region35: #{tpu_custom_call.1} parent=31 // pred_region
          %217 = dma.done %s209, 1280
        $region36: #{tpu_custom_call.1} parent=31 // pred_fallthru
          _
        %p218 = scmp.lt.s32.totalorder %s26, 0
        %s219 = scalar_select %p218, %s26, 0
        %s220 = smul.addr %s219, 8
        %s221 = scalar_lea.vmem %s0, %s220
        %p222 = pneg %p60
        %p223 = pneg %p57
        %s224 = sand.u32 %s75, 1
        %s225 = scalar_lea.sflag [#allocation3], %s224
        %s226 = sand.u32 %s75, 1
        %s227 = smul.addr %s226, 80
        %s228 = scalar_lea.vmem [#allocation2], %s227
        %p229 = pneg %p88
        %p230 = pneg %p85
        %p231 = scmp.lt.s32.totalorder %s26, 0
        %s232 = scalar_select %p231, %s26, 0
        %s233 = smul.addr %s232, 8
        %s234 = scalar_lea.vmem %s2, %s233
        %p235 = pneg %p114
        %p236 = pneg %p111
        %p237 = pneg %p144
        %p238 = pneg %p141
        %s239 = sand.u32 %s131, 1
        %s240 = scalar_lea.sflag [#allocation4], %s239
        %s241 = sand.u32 %s131, 1
        %s242 = smul.addr %s241, 16
        %s243 = scalar_lea.vmem [#allocation5], %s242
        %p244 = scmp.lt.s32.totalorder %s26, 0
        %s245 = scalar_select %p244, %s26, 0
        %s246 = smul.addr %s245, 8
        %s247 = scalar_lea.vmem %s0, %s246
        %s248 = smul.u32 2, %s27
        %p249 = scmp.lt.s32.totalorder %s26, 0
        %s250 = scalar_select %p249, %s26, 0
        %s251 = smul.addr %s250, 8
        %s252 = scalar_lea.vmem %s2, %s251
        %s253 = smul.u32 2, %s27
        %v254 = vld [vmem:[%s247] sm:$0xff]
        %v255 = vld [vmem:[%s212] sm:$0xff]
        %v256 = vld [vmem:[%s212 + $0x8] sm:$0xff]
        %v257 = vld [vmem:[%s212 + $0x10] sm:$0xff]
        %v258 = vld [vmem:[%s212 + $0x18] sm:$0xff]
        %v259 = vld [vmem:[%s212 + $0x20] sm:$0xff]
        %v260 = vld [vmem:[%s212 + $0x28] sm:$0xff]
        %v261 = vld [vmem:[%s212 + $0x30] sm:$0xff]
        %v262 = vld [vmem:[%s212 + $0x38] sm:$0xff]
        %v263 = vld [vmem:[%s212 + $0x40] sm:$0xff]
        %v264 = vld [vmem:[%s212 + $0x48] sm:$0xff]
        %vm265 = vcmask 326656
        %v267 = vsel %vm265, %v254, 0
        %269 = vmatpush.msra.mxu0 0.0
        %270 = vmatpush.msra.mxu0 0.0
        %271 = vmatpush.msra.mxu0 0.0
        %272 = vmatpush.msra.mxu0 0.0
        %273 = vmatpush.msra.mxu0 0.0
        %274 = vmatpush.msra.mxu0 0.0
        %275 = vmatpush.msra.mxu0 0.0
        %276 = vmatpush.msra.mxu0 0.0
        %277 = vmatpush.msra.mxu0 0.0
        %278 = vmatpush.msra.mxu0 0.0
        %279 = vmatpush.msra.mxu0 0.0
        %280 = vmatpush.msra.mxu0 %v263
        %281 = vmatpush.msra.mxu0 %v261
        %282 = vmatpush.msra.mxu0 %v259
        %283 = vmatpush.msra.mxu0 %v257
        %284 = vmatpush.msra.mxu0 %v255
        %285 = vmatmul.f32.gmra.mxu0 %v267
        %v286 = vpop.f32.mrf.mxu0
        %v287 = vadd.f32 0.0, %v286
        %288 = vdwg.mxu0
        %289 = vmatpush.msra.mxu0 0.0
        %290 = vmatpush.msra.mxu0 0.0
        %291 = vmatpush.msra.mxu0 0.0
        %292 = vmatpush.msra.mxu0 0.0
        %293 = vmatpush.msra.mxu0 0.0
        %294 = vmatpush.msra.mxu0 0.0
        %295 = vmatpush.msra.mxu0 0.0
        %296 = vmatpush.msra.mxu0 0.0
        %297 = vmatpush.msra.mxu0 0.0
        %298 = vmatpush.msra.mxu0 0.0
        %299 = vmatpush.msra.mxu0 0.0
        %300 = vmatpush.msra.mxu0 %v264
        %301 = vmatpush.msra.mxu0 %v262
        %302 = vmatpush.msra.mxu0 %v260
        %303 = vmatpush.msra.mxu0 %v258
        %304 = vmatpush.msra.mxu0 %v256
        %305 = vmatmul.f32.gmra.mxu0 %v267
        %v306 = vpop.f32.mrf.mxu0
        %v307 = vadd.f32 0.0, %v306
        %308 = vdwg.mxu0
        %v309 = vmul.f32 %v287, 0.23570226
        %v310 = vmul.f32 %v307, 0.23570226
        %v311 = vld [vmem:[%s252] sm:$0xff]
        %313 = vset.pattern.permute.xlu0 0
        %314 = vperm.xlu0 %313, %v311
        %v315 = vpop.permute.xlu0 %314
        %v317 = vadd.f32 %v309, %v315
        %v318 = vadd.f32 %v310, %v315
        %319 = vst [vmem:[%s243] sm:$0xff] %v317
        %320 = vst [vmem:[%s243 + $0x8] sm:$0xff] %v318
        %s321 = sand.u32 %s131, 1
        %s322 = scalar_lea.sflag [#allocation4], %s321
        %s323 = sand.u32 %s131, 1
        %s324 = smul.addr %s323, 16
        %s325 = scalar_lea.vmem [#allocation5], %s324
        // Predicated region
        $region37: #{tpu_custom_call.1} parent=31 // pred_check
          %p326 = pneg %p141
        $region38: #{tpu_custom_call.1} parent=31 // pred_check_branch
          %328 = sbr.rel (%p326) target = $region40
        $region39: #{tpu_custom_call.1} parent=31 // pred_region
          %s329 = smul.u32 2, %s27
          %331 = vsyncadd %s322, 0
          %s332 = smul.addr %s26, 2
          %s333 = sadd.s32 %s329, %s332
          %s334 = smul.addr %s25, 2
          %s335 = sadd.s32 %s333, %s334
          %s336 = smul.addr %s335, 8
          %s337 = scalar_lea.hbm %s3, %s336
          %s339 = sshll.u32 %s325, 4
          %s340 = int_to_ptr.vmem [resolvable:$true] %s339
          %s341 = sshll.u32 %s337, 4
          %s342 = int_to_ptr.hbm [resolvable:$true] %s341
          %344 = dma.vmem_to_hbm [thread:$0]  %s340, 256, %s342, %s322
        $region40: #{tpu_custom_call.1} parent=31 // pred_fallthru
          _
      $region32: #{tpu_custom_call.1} parent=5 // pred_fallthru
        _
      %p345 = scmp.le.s32.totalorder 2, %s15
      // Predicated region
      $region41: #{tpu_custom_call.1} parent=5 // pred_check
        %p346 = pneg %p345
      $region42: #{tpu_custom_call.1} parent=5 // pred_check_branch
        %348 = sbr.rel (%p346) target = $region44
      $region43: #{tpu_custom_call.1} parent=5 // pred_region
        %s349 = ssub.s32 %s15, 2
        // Predicated region
        $region45: #{tpu_custom_call.1} parent=43 // pred_check
          %p350 = pneg %p147
        $region46: #{tpu_custom_call.1} parent=43 // pred_check_branch
          %352 = sbr.rel (%p350) target = $region48
        $region47: #{tpu_custom_call.1} parent=43 // pred_region
          %s353 = sand.u32 %s132, 1
          %s354 = scalar_lea.sflag [#allocation4], %s353
          %s355 = sand.u32 %s132, 1
          %s356 = smul.addr %s355, 16
          %s357 = scalar_lea.vmem [#allocation5], %s356
          %359 = dma.done %s354, 256
        $region48: #{tpu_custom_call.1} parent=43 // pred_fallthru
          _
      $region44: #{tpu_custom_call.1} parent=5 // pred_fallthru
        _
    $region6: #{tpu_custom_call.1} parent=1 // loop_footer
      %s19 = sadd.s32 1, %s15
    $region7: #{tpu_custom_call.1} parent=1 // loop_footer_branch
      %14 = sbr.rel target = $region3
    $region8: #{tpu_custom_call.1} parent=1 // loop_exit
      _
    %360 = vsyncpa [#allocation3], 1
    %s361 = scalar_lea.sflag [#allocation3], 1
    %362 = vsyncpa %s361, 1
    %363 = vsyncpa [#allocation4], 1
    %s364 = scalar_lea.sflag [#allocation4], 1
    %365 = vsyncpa %s364, 1

</llo_original>
